<compile_context>
chip_gen: v7x
topology: tpu7x:2x2x1
jax: 0.10.0
libtpu: 0.0.40
codegen_flags: <defaults>
</compile_context>

<pallas_src>
import functools

import jax
import jax.numpy as jnp
from jax.experimental import pallas as pl
from jax.experimental.pallas import tpu as pltpu

KERNEL_SIZE = 7
LANE = 128
SUBLANE = 8


def _round_up(x, m):
    return (x + m - 1) // m * m


def _residual_unit_kernel(x_hbm, w_ref, b_ref, o_ref, xbuf, sem, *,
                          block_l, dilation, c_pad, fuse_pairs):
    """Grid = (N, L_tiles). One (batch, length-tile) per grid step.

    x_hbm : (N, L_total, c_pad)  zero-padded NLC input, left in HBM (pl.ANY)
    w_ref : fused  -> (4, 2*c_pad, c_pad) bf16
            single -> (K, c_pad,  c_pad)  bf16        (resident in VMEM)
    b_ref : (1, c_pad) f32
    o_ref : (1, block_l, c_pad)
    xbuf  : VMEM (2, win, c_pad)  double-buffered halo window
    sem   : DMA semaphores (2,)
    """
    pad = (KERNEL_SIZE - 1) * dilation // 2
    win = xbuf.shape[1]

    n = pl.program_id(0)
    j = pl.program_id(1)
    n_tiles = pl.num_programs(1)
    slot = j & 1

    def window_copy(tile, s):
        start = pl.multiple_of(tile * block_l, SUBLANE)
        return pltpu.make_async_copy(
            x_hbm.at[n, pl.ds(start, win)], xbuf.at[s], sem.at[s])

    # Prime the pipeline at the first tile of each batch element.  (The length
    # axis is "arbitrary" so a batch element's tiles run in order on one core;
    # the batch axis is the "parallel"/megacore axis.)
    @pl.when(j == 0)
    def _():
        window_copy(j, slot).start()

    # Prefetch the next tile's halo window while computing the current one.
    @pl.when(j + 1 < n_tiles)
    def _():
        window_copy(j + 1, 1 - slot).start()

    window_copy(j, slot).wait()
    cur = xbuf.at[slot]

    def tap(k):
        # Length window shifted by k*dilation (static offset), cast for the MXU.
        return cur[pl.ds(k * dilation, block_l), :].astype(jnp.bfloat16)

    # Initialize the accumulator with the broadcast bias (saves a full-tile add).
    acc = jnp.broadcast_to(b_ref[...], (block_l, c_pad)).astype(jnp.float32)

    if fuse_pairs:
        # 256-deep contractions: concat two shifted windows along channels.
        n_pairs = w_ref.shape[0]
        for p in range(n_pairs):
            k0 = 2 * p
            k1 = min(2 * p + 1, KERNEL_SIZE - 1)   # dummy partner (zero weights)
            xw = jnp.concatenate([tap(k0), tap(k1)], axis=-1)
            acc = acc + jnp.dot(xw, w_ref[p], preferred_element_type=jnp.float32)
    else:
        for k in range(KERNEL_SIZE):
            acc = acc + jnp.dot(tap(k), w_ref[k],
                                preferred_element_type=jnp.float32)

    # ELU (alpha=1).  Clamp the exp argument so the unselected branch never sees
    # a large positive value (exp stays on the EUP, precision-safe near zero).
    act = jnp.where(acc > 0.0, acc, jnp.exp(jnp.minimum(acc, 0.0)) - 1.0)

    # Residual read from the same (single) DMA'd window -> no duplicate input DMA.
    res = cur[pl.ds(pad, block_l), :].astype(jnp.float32)
    o_ref[0] = (res + act).astype(o_ref.dtype)


def residual_unit(x_ncl, weight, bias, dilation, *, block_l=None):
    """x_ncl: (N, C, L) float32 (PyTorch NCL layout).
    weight: (C_out, C_in, K)  (PyTorch Conv1d layout).  bias: (C_out,).
    Returns (N, C, L)."""
    N, C, L = x_ncl.shape
    K = weight.shape[-1]
    assert K == KERNEL_SIZE
    pad = (K - 1) * dilation // 2

    # Lane-dense channel padding (avoids masked partial stores, fills MXU width).
    c_pad = _round_up(C, LANE)

    # Length-tile size: big enough to amortize per-step overhead, small enough
    # that (halo window + output tile) double-buffers fit comfortably in scoped
    # VMEM on every generation (incl. v7x's 64 MiB physical VMEM).
    if block_l is None:
        block_l = min(512, _round_up(L, SUBLANE))
    block_l = _round_up(block_l, SUBLANE)
    n_tiles = pl.cdiv(L, block_l)
    l_out = n_tiles * block_l
    win = _round_up(block_l + 2 * pad, SUBLANE)     # aligned halo window rows
    l_total = (n_tiles - 1) * block_l + win         # rows required in HBM

    # Boundary glue only: NCL -> NLC, conv zero-pad + alignment slack, channel pad.
    # TODO(synk): when stacking ResidualUnits, keep activations in padded NLC
    # between units to avoid repeating these transposes/pads per unit.
    x_nlc = jnp.transpose(x_ncl, (0, 2, 1))                            # (N, L, C)
    x_pad = jnp.pad(x_nlc, ((0, 0), (pad, l_total - pad - L), (0, c_pad - C)))

    w_kio = jnp.transpose(weight, (2, 1, 0))                           # (K, Cin, Cout)
    w_kio = jnp.pad(w_kio, ((0, 0), (0, c_pad - C), (0, c_pad - C)))

    fuse_pairs = c_pad <= LANE
    if fuse_pairs:
        # Pack taps in pairs along the contraction axis -> (4, 2*c_pad, c_pad);
        # the 8th (missing) tap is zero weights, paired with a dummy window.
        n_pairs = (K + 1) // 2
        w_k = jnp.pad(w_kio, ((0, 2 * n_pairs - K), (0, 0), (0, 0)))
        w_in = w_k.reshape(n_pairs, 2 * c_pad, c_pad).astype(jnp.bfloat16)
    else:
        w_in = w_kio.astype(jnp.bfloat16)

    b_2d = jnp.pad(bias, (0, c_pad - C)).reshape(1, c_pad).astype(jnp.float32)

    kernel = functools.partial(
        _residual_unit_kernel, block_l=block_l, dilation=dilation,
        c_pad=c_pad, fuse_pairs=fuse_pairs)

    out = pl.pallas_call(
        kernel,
        out_shape=jax.ShapeDtypeStruct((N, l_out, c_pad), x_ncl.dtype),
        grid_spec=pltpu.PrefetchScalarGridSpec(
            num_scalar_prefetch=0,
            grid=(N, n_tiles),
            in_specs=[
                pl.BlockSpec(memory_space=pl.ANY),                  # input stays in HBM
                pl.BlockSpec(w_in.shape, lambda n, j: (0, 0, 0)),   # resident weights
                pl.BlockSpec((1, c_pad), lambda n, j: (0, 0)),      # resident bias
            ],
            out_specs=pl.BlockSpec((1, block_l, c_pad), lambda n, j: (n, j, 0)),
            scratch_shapes=[
                pltpu.VMEM((2, win, c_pad), x_ncl.dtype),
                pltpu.SemaphoreType.DMA((2,)),
            ],
        ),
        compiler_params=pltpu.CompilerParams(
            # Batch axis feeds the megacore; the length axis must stay
            # "arbitrary" (in-order) for the cross-step halo prefetch.
            dimension_semantics=("parallel", "arbitrary"),
        ),
    )(x_pad, w_in, b_2d)

    return jnp.transpose(out[:, :L, :C], (0, 2, 1))                  # back to NCL


def _reference(x_ncl, weight, bias, dilation):
    """Plain-JAX reference matching torch.nn.Conv1d + ELU + residual (f32)."""
    pad = (KERNEL_SIZE - 1) * dilation // 2
    conv = jax.lax.conv_general_dilated(
        x_ncl, weight,
        window_strides=(1,),
        padding=[(pad, pad)],
        rhs_dilation=(dilation,),
        dimension_numbers=("NCH", "OIH", "NCH"),
    ) + bias[None, :, None]
    act = jnp.where(conv > 0, conv, jnp.exp(jnp.minimum(conv, 0.0)) - 1.0)
    return x_ncl + act


if __name__ == "__main__":
    # Small shapes consistent with the module: batch=2, channels=4, length=16.
    N, C, L = 2, 4, 16

    key = jax.random.PRNGKey(0)
    k_x, k_w, k_b = jax.random.split(key, 3)

    x = jax.random.normal(k_x, (N, C, L), dtype=jnp.float32)

    # Deterministic Conv1d parameter init (PyTorch-style uniform bound).
    fan_in = C * KERNEL_SIZE
    bound = 1.0 / (fan_in ** 0.5)
    weight = jax.random.uniform(k_w, (C, C, KERNEL_SIZE), jnp.float32, -bound, bound)
    bias = jax.random.uniform(k_b, (C,), jnp.float32, -bound, bound)

    # dilation=2, block_l=8 -> two L-tiles per batch element: exercises the halo
    # windows and the double-buffered manual DMA path.
    out = residual_unit(x, weight, bias, dilation=2, block_l=8)
    out = jax.block_until_ready(out)
    ref = _reference(x, weight, bias, dilation=2)
    assert out.shape == (N, C, L)
    err = float(jnp.max(jnp.abs(out - ref)))
    assert err < 5e-2, f"mismatch vs reference (dilation=2): max abs err {err}"

    # dilation=1 with the default tile size -> single-tile path.
    out1 = residual_unit(x, weight, bias, dilation=1)
    out1 = jax.block_until_ready(out1)
    ref1 = _reference(x, weight, bias, dilation=1)
    err1 = float(jnp.max(jnp.abs(out1 - ref1)))
    assert err1 < 5e-2, f"mismatch vs reference (dilation=1): max abs err {err1}"

    print("KERNEL_OK")
</pallas_src>

<mosaic_0001>
module attributes {stable_mosaic.version = 11 : i64} {
  func.func @_residual_unit_kernel(%arg0: i32, %arg1: i32, %arg2: memref<2x32x128xf32, #tpu.memory_space<any>>, %arg3: memref<4x256x128xbf16, #tpu.memory_space<vmem>>, %arg4: memref<1x128xf32, #tpu.memory_space<vmem>>, %arg5: memref<1x8x128xf32, #tpu.memory_space<vmem>>, %arg6: memref<2x24x128xf32, #tpu.memory_space<vmem>>, %arg7: memref<2x!tpu.dma_semaphore, #tpu.memory_space<semaphore_mem>>) attributes {dimension_semantics = [#tpu.dimension_semantics<parallel>, #tpu.dimension_semantics<arbitrary>], iteration_bounds = array<i64: 2, 2>, scalar_prefetch = 0 : i64, scratch_operands = 2 : i64, tpu.core_type = #tpu.core_type<tc>, window_params = [{}, {pipeline_mode = #tpu.pipeline_mode<synchronous>, transform_indices = @transform_1, window_bounds = array<i64: 4, 256, 128>}, {pipeline_mode = #tpu.pipeline_mode<synchronous>, transform_indices = @transform_2, window_bounds = array<i64: 1, 128>}, {transform_indices = @transform_3, window_bounds = array<i64: 1, 8, 128>}]} {
    %c1_i32 = arith.constant 1 : i32
    %0 = arith.andi %arg1, %c1_i32 : i32
    %c0_i32 = arith.constant 0 : i32
    %1 = arith.cmpi eq, %arg1, %c0_i32 : i32
    %2 = arith.extui %1 : i1 to i32
    %c0_i32_0 = arith.constant 0 : i32
    %3 = arith.cmpi ne, %2, %c0_i32_0 : i32
    scf.if %3 {
      %c8_i32_56 = arith.constant 8 : i32
      %86 = arith.muli %arg1, %c8_i32_56 : i32
      %87 = tpu.assume_multiple %86, 8 : i32
      %c0_i32_57 = arith.constant 0 : i32
      %88 = tpu.memref_slice %arg2[%arg0, %87, %c0_i32_57] : memref<2x32x128xf32, #tpu.memory_space<any>> -> memref<1x24x128xf32, #tpu.memory_space<any>>
      %89 = tpu.memref_squeeze %88 : memref<1x24x128xf32, #tpu.memory_space<any>> -> memref<24x128xf32, #tpu.memory_space<any>>
      %c0_i32_58 = arith.constant 0 : i32
      %c0_i32_59 = arith.constant 0 : i32
      %90 = tpu.memref_slice %arg6[%0, %c0_i32_58, %c0_i32_59] : memref<2x24x128xf32, #tpu.memory_space<vmem>> -> memref<1x24x128xf32, #tpu.memory_space<vmem>>
      %91 = tpu.memref_squeeze %90 : memref<1x24x128xf32, #tpu.memory_space<vmem>> -> memref<24x128xf32, #tpu.memory_space<vmem>>
      %92 = tpu.memref_slice %arg7[%0] : memref<2x!tpu.dma_semaphore, #tpu.memory_space<semaphore_mem>> -> memref<1x!tpu.dma_semaphore, #tpu.memory_space<semaphore_mem>>
      %93 = tpu.memref_squeeze %92 : memref<1x!tpu.dma_semaphore, #tpu.memory_space<semaphore_mem>> -> memref<!tpu.dma_semaphore, #tpu.memory_space<semaphore_mem>>
      tpu.enqueue_dma source(%89 : memref<24x128xf32, #tpu.memory_space<any>>) target(%91 : memref<24x128xf32, #tpu.memory_space<vmem>>) target_semaphore(%93 : memref<!tpu.dma_semaphore, #tpu.memory_space<semaphore_mem>>)
    } else {
    }
    %c1_i32_1 = arith.constant 1 : i32
    %4 = arith.addi %arg1, %c1_i32_1 : i32
    %c2_i32 = arith.constant 2 : i32
    %5 = arith.cmpi slt, %4, %c2_i32 : i32
    %6 = arith.extui %5 : i1 to i32
    %c0_i32_2 = arith.constant 0 : i32
    %7 = arith.cmpi ne, %6, %c0_i32_2 : i32
    scf.if %7 {
      %c1_i32_56 = arith.constant 1 : i32
      %86 = arith.addi %arg1, %c1_i32_56 : i32
      %c1_i32_57 = arith.constant 1 : i32
      %87 = arith.subi %c1_i32_57, %0 : i32
      %c8_i32_58 = arith.constant 8 : i32
      %88 = arith.muli %86, %c8_i32_58 : i32
      %89 = tpu.assume_multiple %88, 8 : i32
      %c0_i32_59 = arith.constant 0 : i32
      %90 = tpu.memref_slice %arg2[%arg0, %89, %c0_i32_59] : memref<2x32x128xf32, #tpu.memory_space<any>> -> memref<1x24x128xf32, #tpu.memory_space<any>>
      %91 = tpu.memref_squeeze %90 : memref<1x24x128xf32, #tpu.memory_space<any>> -> memref<24x128xf32, #tpu.memory_space<any>>
      %c0_i32_60 = arith.constant 0 : i32
      %c0_i32_61 = arith.constant 0 : i32
      %92 = tpu.memref_slice %arg6[%87, %c0_i32_60, %c0_i32_61] : memref<2x24x128xf32, #tpu.memory_space<vmem>> -> memref<1x24x128xf32, #tpu.memory_space<vmem>>
      %93 = tpu.memref_squeeze %92 : memref<1x24x128xf32, #tpu.memory_space<vmem>> -> memref<24x128xf32, #tpu.memory_space<vmem>>
      %94 = tpu.memref_slice %arg7[%87] : memref<2x!tpu.dma_semaphore, #tpu.memory_space<semaphore_mem>> -> memref<1x!tpu.dma_semaphore, #tpu.memory_space<semaphore_mem>>
      %95 = tpu.memref_squeeze %94 : memref<1x!tpu.dma_semaphore, #tpu.memory_space<semaphore_mem>> -> memref<!tpu.dma_semaphore, #tpu.memory_space<semaphore_mem>>
      tpu.enqueue_dma source(%91 : memref<24x128xf32, #tpu.memory_space<any>>) target(%93 : memref<24x128xf32, #tpu.memory_space<vmem>>) target_semaphore(%95 : memref<!tpu.dma_semaphore, #tpu.memory_space<semaphore_mem>>)
    } else {
    }
    %c8_i32 = arith.constant 8 : i32
    %8 = arith.muli %arg1, %c8_i32 : i32
    %9 = tpu.assume_multiple %8, 8 : i32
    %c0_i32_3 = arith.constant 0 : i32
    %10 = tpu.memref_slice %arg2[%arg0, %9, %c0_i32_3] : memref<2x32x128xf32, #tpu.memory_space<any>> -> memref<1x24x128xf32, #tpu.memory_space<any>>
    %11 = tpu.memref_squeeze %10 : memref<1x24x128xf32, #tpu.memory_space<any>> -> memref<24x128xf32, #tpu.memory_space<any>>
    %c0_i32_4 = arith.constant 0 : i32
    %c0_i32_5 = arith.constant 0 : i32
    %12 = tpu.memref_slice %arg6[%0, %c0_i32_4, %c0_i32_5] : memref<2x24x128xf32, #tpu.memory_space<vmem>> -> memref<1x24x128xf32, #tpu.memory_space<vmem>>
    %13 = tpu.memref_squeeze %12 : memref<1x24x128xf32, #tpu.memory_space<vmem>> -> memref<24x128xf32, #tpu.memory_space<vmem>>
    %14 = tpu.memref_slice %arg7[%0] : memref<2x!tpu.dma_semaphore, #tpu.memory_space<semaphore_mem>> -> memref<1x!tpu.dma_semaphore, #tpu.memory_space<semaphore_mem>>
    %15 = tpu.memref_squeeze %14 : memref<1x!tpu.dma_semaphore, #tpu.memory_space<semaphore_mem>> -> memref<!tpu.dma_semaphore, #tpu.memory_space<semaphore_mem>>
    tpu.wait_dma2 semaphore(%15 : memref<!tpu.dma_semaphore, #tpu.memory_space<semaphore_mem>>) src(%11 : memref<24x128xf32, #tpu.memory_space<any>>) dst(%13 : memref<24x128xf32, #tpu.memory_space<vmem>>)
    %c0 = arith.constant 0 : index
    %c0_6 = arith.constant 0 : index
    %16 = vector.load %arg4[%c0, %c0_6] : memref<1x128xf32, #tpu.memory_space<vmem>>, vector<1x128xf32>
    %17 = vector.shape_cast %16 : vector<1x128xf32> to vector<1x128xf32>
    %18 = vector.broadcast %17 : vector<1x128xf32> to vector<8x128xf32>
    %c0_i32_7 = arith.constant 0 : i32
    %c0_i32_8 = arith.constant 0 : i32
    %19 = tpu.memref_slice %arg6[%0, %c0_i32_7, %c0_i32_8] : memref<2x24x128xf32, #tpu.memory_space<vmem>> -> memref<1x24x128xf32, #tpu.memory_space<vmem>>
    %20 = tpu.memref_squeeze %19 : memref<1x24x128xf32, #tpu.memory_space<vmem>> -> memref<24x128xf32, #tpu.memory_space<vmem>>
    %c0_9 = arith.constant 0 : index
    %c0_10 = arith.constant 0 : index
    %21 = vector.load %20[%c0_9, %c0_10] : memref<24x128xf32, #tpu.memory_space<vmem>>, vector<8x128xf32>
    %22 = arith.truncf %21 : vector<8x128xf32> to vector<8x128xbf16>
    %c0_i32_11 = arith.constant 0 : i32
    %c0_i32_12 = arith.constant 0 : i32
    %23 = tpu.memref_slice %arg6[%0, %c0_i32_11, %c0_i32_12] : memref<2x24x128xf32, #tpu.memory_space<vmem>> -> memref<1x24x128xf32, #tpu.memory_space<vmem>>
    %24 = tpu.memref_squeeze %23 : memref<1x24x128xf32, #tpu.memory_space<vmem>> -> memref<24x128xf32, #tpu.memory_space<vmem>>
    %c2 = arith.constant 2 : index
    %c0_13 = arith.constant 0 : index
    %25 = vector.load %24[%c2, %c0_13] : memref<24x128xf32, #tpu.memory_space<vmem>>, vector<8x128xf32>
    %26 = arith.truncf %25 : vector<8x128xf32> to vector<8x128xbf16>
    %27 = tpu.concatenate %22, %26 in 1 : vector<8x128xbf16>, vector<8x128xbf16> -> vector<8x256xbf16>
    %c0_14 = arith.constant 0 : index
    %c0_15 = arith.constant 0 : index
    %c0_16 = arith.constant 0 : index
    %28 = vector.load %arg3[%c0_14, %c0_15, %c0_16] : memref<4x256x128xbf16, #tpu.memory_space<vmem>>, vector<1x256x128xbf16>
    %29 = vector.shape_cast %28 : vector<1x256x128xbf16> to vector<256x128xbf16>
    %cst = arith.constant dense<0.000000e+00> : vector<8x128xf32>
    %30 = tpu.matmul %27, %29, %cst {dimension_numbers = #tpu.dot_dimension_numbers<[1], [0], [0], [1], [0, 0, 1, 1], [], []>} : vector<8x256xbf16>, vector<256x128xbf16>, vector<8x128xf32> -> vector<8x128xf32>
    %31 = arith.addf %18, %30 : vector<8x128xf32>
    %c0_i32_17 = arith.constant 0 : i32
    %c0_i32_18 = arith.constant 0 : i32
    %32 = tpu.memref_slice %arg6[%0, %c0_i32_17, %c0_i32_18] : memref<2x24x128xf32, #tpu.memory_space<vmem>> -> memref<1x24x128xf32, #tpu.memory_space<vmem>>
    %33 = tpu.memref_squeeze %32 : memref<1x24x128xf32, #tpu.memory_space<vmem>> -> memref<24x128xf32, #tpu.memory_space<vmem>>
    %c4 = arith.constant 4 : index
    %c0_19 = arith.constant 0 : index
    %34 = vector.load %33[%c4, %c0_19] : memref<24x128xf32, #tpu.memory_space<vmem>>, vector<8x128xf32>
    %35 = arith.truncf %34 : vector<8x128xf32> to vector<8x128xbf16>
    %c0_i32_20 = arith.constant 0 : i32
    %c0_i32_21 = arith.constant 0 : i32
    %36 = tpu.memref_slice %arg6[%0, %c0_i32_20, %c0_i32_21] : memref<2x24x128xf32, #tpu.memory_space<vmem>> -> memref<1x24x128xf32, #tpu.memory_space<vmem>>
    %37 = tpu.memref_squeeze %36 : memref<1x24x128xf32, #tpu.memory_space<vmem>> -> memref<24x128xf32, #tpu.memory_space<vmem>>
    %c6 = arith.constant 6 : index
    %c0_22 = arith.constant 0 : index
    %38 = vector.load %37[%c6, %c0_22] : memref<24x128xf32, #tpu.memory_space<vmem>>, vector<8x128xf32>
    %39 = arith.truncf %38 : vector<8x128xf32> to vector<8x128xbf16>
    %40 = tpu.concatenate %35, %39 in 1 : vector<8x128xbf16>, vector<8x128xbf16> -> vector<8x256xbf16>
    %c1 = arith.constant 1 : index
    %c0_23 = arith.constant 0 : index
    %c0_24 = arith.constant 0 : index
    %41 = vector.load %arg3[%c1, %c0_23, %c0_24] : memref<4x256x128xbf16, #tpu.memory_space<vmem>>, vector<1x256x128xbf16>
    %42 = vector.shape_cast %41 : vector<1x256x128xbf16> to vector<256x128xbf16>
    %cst_25 = arith.constant dense<0.000000e+00> : vector<8x128xf32>
    %43 = tpu.matmul %40, %42, %cst_25 {dimension_numbers = #tpu.dot_dimension_numbers<[1], [0], [0], [1], [0, 0, 1, 1], [], []>} : vector<8x256xbf16>, vector<256x128xbf16>, vector<8x128xf32> -> vector<8x128xf32>
    %44 = arith.addf %31, %43 : vector<8x128xf32>
    %c0_i32_26 = arith.constant 0 : i32
    %c0_i32_27 = arith.constant 0 : i32
    %45 = tpu.memref_slice %arg6[%0, %c0_i32_26, %c0_i32_27] : memref<2x24x128xf32, #tpu.memory_space<vmem>> -> memref<1x24x128xf32, #tpu.memory_space<vmem>>
    %46 = tpu.memref_squeeze %45 : memref<1x24x128xf32, #tpu.memory_space<vmem>> -> memref<24x128xf32, #tpu.memory_space<vmem>>
    %c8 = arith.constant 8 : index
    %c0_28 = arith.constant 0 : index
    %47 = vector.load %46[%c8, %c0_28] : memref<24x128xf32, #tpu.memory_space<vmem>>, vector<8x128xf32>
    %48 = arith.truncf %47 : vector<8x128xf32> to vector<8x128xbf16>
    %c0_i32_29 = arith.constant 0 : i32
    %c0_i32_30 = arith.constant 0 : i32
    %49 = tpu.memref_slice %arg6[%0, %c0_i32_29, %c0_i32_30] : memref<2x24x128xf32, #tpu.memory_space<vmem>> -> memref<1x24x128xf32, #tpu.memory_space<vmem>>
    %50 = tpu.memref_squeeze %49 : memref<1x24x128xf32, #tpu.memory_space<vmem>> -> memref<24x128xf32, #tpu.memory_space<vmem>>
    %c10 = arith.constant 10 : index
    %c0_31 = arith.constant 0 : index
    %51 = vector.load %50[%c10, %c0_31] : memref<24x128xf32, #tpu.memory_space<vmem>>, vector<8x128xf32>
    %52 = arith.truncf %51 : vector<8x128xf32> to vector<8x128xbf16>
    %53 = tpu.concatenate %48, %52 in 1 : vector<8x128xbf16>, vector<8x128xbf16> -> vector<8x256xbf16>
    %c2_32 = arith.constant 2 : index
    %c0_33 = arith.constant 0 : index
    %c0_34 = arith.constant 0 : index
    %54 = vector.load %arg3[%c2_32, %c0_33, %c0_34] : memref<4x256x128xbf16, #tpu.memory_space<vmem>>, vector<1x256x128xbf16>
    %55 = vector.shape_cast %54 : vector<1x256x128xbf16> to vector<256x128xbf16>
    %cst_35 = arith.constant dense<0.000000e+00> : vector<8x128xf32>
    %56 = tpu.matmul %53, %55, %cst_35 {dimension_numbers = #tpu.dot_dimension_numbers<[1], [0], [0], [1], [0, 0, 1, 1], [], []>} : vector<8x256xbf16>, vector<256x128xbf16>, vector<8x128xf32> -> vector<8x128xf32>
    %57 = arith.addf %44, %56 : vector<8x128xf32>
    %c0_i32_36 = arith.constant 0 : i32
    %c0_i32_37 = arith.constant 0 : i32
    %58 = tpu.memref_slice %arg6[%0, %c0_i32_36, %c0_i32_37] : memref<2x24x128xf32, #tpu.memory_space<vmem>> -> memref<1x24x128xf32, #tpu.memory_space<vmem>>
    %59 = tpu.memref_squeeze %58 : memref<1x24x128xf32, #tpu.memory_space<vmem>> -> memref<24x128xf32, #tpu.memory_space<vmem>>
    %c12 = arith.constant 12 : index
    %c0_38 = arith.constant 0 : index
    %60 = vector.load %59[%c12, %c0_38] : memref<24x128xf32, #tpu.memory_space<vmem>>, vector<8x128xf32>
    %61 = arith.truncf %60 : vector<8x128xf32> to vector<8x128xbf16>
    %c0_i32_39 = arith.constant 0 : i32
    %c0_i32_40 = arith.constant 0 : i32
    %62 = tpu.memref_slice %arg6[%0, %c0_i32_39, %c0_i32_40] : memref<2x24x128xf32, #tpu.memory_space<vmem>> -> memref<1x24x128xf32, #tpu.memory_space<vmem>>
    %63 = tpu.memref_squeeze %62 : memref<1x24x128xf32, #tpu.memory_space<vmem>> -> memref<24x128xf32, #tpu.memory_space<vmem>>
    %c12_41 = arith.constant 12 : index
    %c0_42 = arith.constant 0 : index
    %64 = vector.load %63[%c12_41, %c0_42] : memref<24x128xf32, #tpu.memory_space<vmem>>, vector<8x128xf32>
    %65 = arith.truncf %64 : vector<8x128xf32> to vector<8x128xbf16>
    %66 = tpu.concatenate %61, %65 in 1 : vector<8x128xbf16>, vector<8x128xbf16> -> vector<8x256xbf16>
    %c3 = arith.constant 3 : index
    %c0_43 = arith.constant 0 : index
    %c0_44 = arith.constant 0 : index
    %67 = vector.load %arg3[%c3, %c0_43, %c0_44] : memref<4x256x128xbf16, #tpu.memory_space<vmem>>, vector<1x256x128xbf16>
    %68 = vector.shape_cast %67 : vector<1x256x128xbf16> to vector<256x128xbf16>
    %cst_45 = arith.constant dense<0.000000e+00> : vector<8x128xf32>
    %69 = tpu.matmul %66, %68, %cst_45 {dimension_numbers = #tpu.dot_dimension_numbers<[1], [0], [0], [1], [0, 0, 1, 1], [], []>} : vector<8x256xbf16>, vector<256x128xbf16>, vector<8x128xf32> -> vector<8x128xf32>
    %70 = arith.addf %57, %69 : vector<8x128xf32>
    %cst_46 = arith.constant 0.000000e+00 : f32
    %71 = vector.broadcast %cst_46 : f32 to vector<8x128xf32>
    %72 = arith.cmpf ogt, %70, %71 : vector<8x128xf32>
    %cst_47 = arith.constant 0.000000e+00 : f32
    %73 = vector.broadcast %cst_47 : f32 to vector<8x128xf32>
    %74 = arith.minimumf %70, %73 : vector<8x128xf32>
    %75 = math.exp %74 : vector<8x128xf32>
    %cst_48 = arith.constant 1.000000e+00 : f32
    %76 = vector.broadcast %cst_48 : f32 to vector<8x128xf32>
    %77 = arith.subf %75, %76 : vector<8x128xf32>
    %78 = arith.select %72, %70, %77 : vector<8x128xi1>, vector<8x128xf32>
    %c0_i32_49 = arith.constant 0 : i32
    %c0_i32_50 = arith.constant 0 : i32
    %79 = tpu.memref_slice %arg6[%0, %c0_i32_49, %c0_i32_50] : memref<2x24x128xf32, #tpu.memory_space<vmem>> -> memref<1x24x128xf32, #tpu.memory_space<vmem>>
    %80 = tpu.memref_squeeze %79 : memref<1x24x128xf32, #tpu.memory_space<vmem>> -> memref<24x128xf32, #tpu.memory_space<vmem>>
    %c6_51 = arith.constant 6 : index
    %c0_52 = arith.constant 0 : index
    %81 = vector.load %80[%c6_51, %c0_52] : memref<24x128xf32, #tpu.memory_space<vmem>>, vector<8x128xf32>
    %82 = arith.addf %81, %78 : vector<8x128xf32>
    %c0_53 = arith.constant 0 : index
    %c0_54 = arith.constant 0 : index
    %c0_55 = arith.constant 0 : index
    %83 = vector.load %arg5[%c0_53, %c0_54, %c0_55] : memref<1x8x128xf32, #tpu.memory_space<vmem>>, vector<1x8x128xf32>
    %84 = vector.shape_cast %83 : vector<1x8x128xf32> to vector<8x128xf32>
    %85 = vector.shape_cast %82 : vector<8x128xf32> to vector<1x8x128xf32>
    tpu.vector_store %arg5[%c0_53, %c0_54, %c0_55], %85 {strides = array<i32>} : memref<1x8x128xf32, #tpu.memory_space<vmem>>, vector<1x8x128xf32>,
    return
  }
  func.func @transform_1(%arg0: i32, %arg1: i32) -> (i32, i32, i32) {
    %c0_i32 = arith.constant 0 : i32
    %c0_i32_0 = arith.constant 0 : i32
    %c0_i32_1 = arith.constant 0 : i32
    %c0_i32_2 = arith.constant 0 : i32
    return %c0_i32, %c0_i32_0, %c0_i32_1 : i32, i32, i32
  }
  func.func @transform_2(%arg0: i32, %arg1: i32) -> (i32, i32) {
    %c0_i32 = arith.constant 0 : i32
    %c0_i32_0 = arith.constant 0 : i32
    %c0_i32_1 = arith.constant 0 : i32
    return %c0_i32, %c0_i32_0 : i32, i32
  }
  func.func @transform_3(%arg0: i32, %arg1: i32) -> (i32, i32, i32) {
    %c0_i32 = arith.constant 0 : i32
    %c0_i32_0 = arith.constant 0 : i32
    return %arg0, %arg1, %c0_i32 : i32, i32, i32
  }
}

</mosaic_0001>

<llo_original>
// kernel: tpu_custom_call.1
$region0: #{tpu_custom_call.1}
  #allocation0 [shape = 'u32[]', space=smem, size = 0x4, offset = 0x4, fixed_abs, tag = 'smem constant byte address 0x4 - core index']
  #allocation1 [shape = 'u32[144,128]{1,0:T(1,128)}', space=vmem, size = 0x12000, scoped, tag = 'internal scratch']
  #allocation2 [shape = 'f32[2,24,128]{2,1,0:T(8,128)}', space=vmem, size = 0x6000, scoped, tag = 'scratch operand']
  #allocation3 [shape = 's32[2]{0}', space=sflag, size = 0x8, scoped, tag = 'scratch operand']
  #allocation8 [shape = 's32[]', space=sflag, size = 0x4, offset = 0, fixed_abs, tag = 'sflag constant byte address 0x0 - dummy sync flag']
  #allocation9 [shape = 's32[]', space=sflag, size = 0x4, offset = 0, fixed_abs, tag = 'sflag constant byte address 0x0 - dummy sync flag']
  #allocation10 [shape = 'u32[]', space=smem, size = 0x4, offset = 0x44, fixed_abs, tag = 'smem constant byte address 0x44 - assertion arg 0']
  #allocation11 [shape = 'u32[]', space=smem, size = 0x4, offset = 0x48, fixed_abs, tag = 'smem constant byte address 0x48 - assertion arg 1']
  #allocation12 [shape = 's32[]', space=sflag, size = 0x4, offset = 0, fixed_abs, tag = 'sflag constant byte address 0x0 - dummy sync flag']
  #allocation13 [shape = 's32[]', space=sflag, size = 0x4, offset = 0, fixed_abs, tag = 'sflag constant byte address 0x0 - dummy sync flag']
  %s0 = inlined_call_operand.hbm [shape: f32[2,32,128], index: 0, kind: input, shape index: {}]
  %s1 = inlined_call_operand.hbm [shape: bf16[4,256,128], index: 1, kind: input, shape index: {}]
  %s2 = inlined_call_operand.vmem [shape: f32[1,128], index: 2, kind: input, shape index: {}]
  %s3 = inlined_call_operand.hbm [shape: f32[2,16,128], index: 3, kind: output, shape index: {}]
  %s4 = sld [smem:[#allocation0]]
  $region61: #{tpu_custom_call.1} parent=0
    _
  %s6 = ssub.s32 1, %s4
  %s7 = scalar_select 0, %s6, %s4
  $region1: #{tpu_custom_call.1} parent=0
    #allocation4 [shape = 'u8[262144]{0}', space=vmem, size = 0x40000, scoped, tag = 'input window, operand 1, single buffered']
    #allocation5 [shape = 's32[2]{0}', space=sflag, size = 0x8, scoped, tag = 'scoped memory for tpu_custom_call.1']
    #allocation6 [shape = 's32[2]{0}', space=sflag, size = 0x8, scoped, tag = 'scoped memory for tpu_custom_call.1']
    #allocation7 [shape = 'u8[8192]{0}', space=vmem, size = 0x2000, scoped, tag = 'output window, operand 0']
    %8 = vsyncpa [#allocation5], 0
    %9 = vsyncpa [#allocation6], 0
    %s10 = scalar_lea.sflag [#allocation6], 1
    %11 = vsyncpa %s10, 0
    loop: start=0, step=1, limit=6
    $region2: #{tpu_custom_call.1} parent=1 // loop_pre_header
      _
    $region3: #{tpu_custom_call.1} parent=1 // loop_header
      %s13 = sphi 0, %s17
      %p14 = scmp.ge.s32.totalorder %s13, 6
      %s20 = sphi 0, %s32
      %s21 = sphi 0, %s28
      %s22 = sphi 0, %s20
      %s23 = sphi 0, %s21
      %s24 = sphi 0, %s22
      %s25 = sphi 0, %s23
      %s33 = sphi 0, %s33
      %s35 = sphi 0, %s33
      %s36 = sphi 0, %s35
      %s50 = sphi 0, %s36
      %s54 = sphi 0, %s54
      %s56 = sphi 0, %s54
      %s57 = sphi 0, %s56
      %s71 = sphi 0, %s57
      %s79 = sphi 0, %s81
      %s82 = sphi 0, %s79
      %s83 = sphi 0, %s82
      %s99 = sphi 0, %s83
    $region4: #{tpu_custom_call.1} parent=1 // loop_header_branch
      %16 = sbr.rel (%p14) target = $region8
    $region5: #{tpu_custom_call.1} parent=1 // loop_body
      %s18 = ssub.s32 %s13, 1
      %s19 = ssub.s32 %s13, 2
      %s26 = sadd.s32 1, %s21
      %p27 = scmp.ge.s32.totalorder %s26, 2
      %s28 = scalar_select %p27, 0, %s26
      %s29 = sadd.s32 1, %s20
      %s30 = scalar_select %p27, %s29, %s20
      %p31 = scmp.ge.s32.totalorder %s30, 2
      %s32 = scalar_select %p31, 0, %s30
      %s34 = sadd.s32 %s33, 1
      %p37 = scmp.eq.s32.totalorder %s13, 3
      %p38 = scmp.ne.s32.totalorder %s33, %s35
      %p39 = scmp.eq.s32.totalorder %s13, 0
      %p40 = por %p38, %p39
      %p41 = scmp.ne.s32.totalorder %s33, %s35
      %p42 = scmp.eq.s32.totalorder %s18, 3
      %p43 = por %p41, %p42
      %p44 = scmp.ne.s32.totalorder %s35, %s36
      %p45 = scmp.eq.s32.totalorder %s18, 0
      %p46 = por %p44, %p45
      %p47 = scmp.ne.s32.totalorder %s35, %s36
      %p48 = scmp.eq.s32.totalorder %s19, 3
      %p49 = por %p47, %p48
      %p51 = scmp.ne.s32.totalorder %s36, %s50
      %p52 = scmp.eq.s32.totalorder %s19, 0
      %p53 = por %p51, %p52
      %s55 = sadd.s32 %s54, 1
      %p58 = scmp.eq.s32.totalorder %s13, 3
      %p59 = scmp.ne.s32.totalorder %s54, %s56
      %p60 = scmp.eq.s32.totalorder %s13, 0
      %p61 = por %p59, %p60
      %p62 = scmp.ne.s32.totalorder %s54, %s56
      %p63 = scmp.eq.s32.totalorder %s18, 3
      %p64 = por %p62, %p63
      %p65 = scmp.ne.s32.totalorder %s56, %s57
      %p66 = scmp.eq.s32.totalorder %s18, 0
      %p67 = por %p65, %p66
      %p68 = scmp.ne.s32.totalorder %s56, %s57
      %p69 = scmp.eq.s32.totalorder %s19, 3
      %p70 = por %p68, %p69
      %p72 = scmp.ne.s32.totalorder %s57, %s71
      %p73 = scmp.eq.s32.totalorder %s19, 0
      %p74 = por %p72, %p73
      %s75 = ssub.s32 %s20, %s32
      %s76 = ssub.s32 %s21, %s28
      %s77 = sor.u32 %s75, %s76
      %p78 = scmp.eq.s32.totalorder %s77, 0
      %s80 = sadd.s32 %s79, 1
      %s81 = scalar_select %p78, %s79, %s80
      %p84 = pneg %p78
      %p85 = scmp.eq.s32.totalorder %s13, 3
      %p86 = por %p84, %p85
      %p87 = scmp.ne.s32.totalorder %s79, %s82
      %p88 = scmp.eq.s32.totalorder %s13, 0
      %p89 = por %p87, %p88
      %p90 = scmp.ne.s32.totalorder %s79, %s82
      %p91 = scmp.eq.s32.totalorder %s18, 3
      %p92 = por %p90, %p91
      %p93 = scmp.ne.s32.totalorder %s82, %s83
      %p94 = scmp.eq.s32.totalorder %s18, 0
      %p95 = por %p93, %p94
      %p96 = scmp.ne.s32.totalorder %s82, %s83
      %p97 = scmp.eq.s32.totalorder %s19, 3
      %p98 = por %p96, %p97
      %p100 = scmp.ne.s32.totalorder %s83, %s99
      %p101 = scmp.eq.s32.totalorder %s19, 0
      %p102 = por %p100, %p101
      %p103 = scmp.le.s32.totalorder 1, %s13
      %p104 = scmp.lt.s32.totalorder %s13, 5
      %p105 = pnand %p103, %p104
      %p106 = pneg %p105
      // Predicated region
      $region9: #{tpu_custom_call.1} parent=5 // pred_check
        _
      $region10: #{tpu_custom_call.1} parent=5 // pred_check_branch
        %108 = sbr.rel (%p105) target = $region12
      $region11: #{tpu_custom_call.1} parent=5 // pred_region
        %s109 = ssub.s32 %s13, 1
        // Predicated region
        $region13: #{tpu_custom_call.1} parent=11 // pred_check
          %p110 = pneg %p46
        $region14: #{tpu_custom_call.1} parent=11 // pred_check_branch
          %112 = sbr.rel (%p110) target = $region16
        $region15: #{tpu_custom_call.1} parent=11 // pred_region
          %s114 = ssub.s32 8192, 8192
          %115 = vsyncadd [#allocation5], %s114
          %s116 = sshll.u32 [#allocation4], 4
          %s117 = int_to_ptr.vmem [resolvable:$true] %s116
          %122 = dma.hbm_to_vmem [thread:$0]  %s1, 8192, %s117, [#allocation5], 64, 64, 4
        $region16: #{tpu_custom_call.1} parent=11 // pred_fallthru
          _
        // Predicated region
        $region17: #{tpu_custom_call.1} parent=11 // pred_check
          %p123 = pneg %p67
        $region18: #{tpu_custom_call.1} parent=11 // pred_check_branch
          %125 = sbr.rel (%p123) target = $region20
        $region19: #{tpu_custom_call.1} parent=11 // pred_region
          _
        $region20: #{tpu_custom_call.1} parent=11 // pred_fallthru
          _
      $region12: #{tpu_custom_call.1} parent=5 // pred_fallthru
        _
      %p126 = scmp.lt.s32.totalorder %s13, 4
      // Predicated region
      $region21: #{tpu_custom_call.1} parent=5 // pred_check
        %p127 = pneg %p126
      $region22: #{tpu_custom_call.1} parent=5 // pred_check_branch
        %129 = sbr.rel (%p127) target = $region24
      $region23: #{tpu_custom_call.1} parent=5 // pred_region
        _
      $region24: #{tpu_custom_call.1} parent=5 // pred_fallthru
        _
      %p130 = scmp.le.s32.totalorder 1, %s13
      %p131 = scmp.lt.s32.totalorder %s13, 5
      %p132 = pnand %p130, %p131
      %p133 = pneg %p132
      // Predicated region
      $region25: #{tpu_custom_call.1} parent=5 // pred_check
        _
      $region26: #{tpu_custom_call.1} parent=5 // pred_check_branch
        %135 = sbr.rel (%p132) target = $region28
      $region27: #{tpu_custom_call.1} parent=5 // pred_region
        %s136 = ssub.s32 %s13, 1
        // Predicated region
        $region29: #{tpu_custom_call.1} parent=27 // pred_check
          %p137 = pneg %p46
        $region30: #{tpu_custom_call.1} parent=27 // pred_check_branch
          %139 = sbr.rel (%p137) target = $region32
        $region31: #{tpu_custom_call.1} parent=27 // pred_region
          %140 = dma.done [#allocation5], 8192
        $region32: #{tpu_custom_call.1} parent=27 // pred_fallthru
          _
        %p141 = pneg %p46
        %p142 = pneg %p43
        %p143 = pneg %p67
        %p144 = pneg %p64
        %p145 = pneg %p95
        %p146 = pneg %p92
        %s147 = sand.u32 %s82, 1
        %s148 = scalar_lea.sflag [#allocation6], %s147
        %s149 = sand.u32 %s82, 1
        %s150 = smul.addr %s149, 8
        %s151 = scalar_lea.vmem [#allocation7], %s150
        %s153 = sand.u32 %s23, 1
        %p154 = scmp.eq.s32.totalorder %s23, 0
        // Predicated region
        $region33: #{tpu_custom_call.1} parent=27 // pred_check
          %p155 = pneg %p154
        $region34: #{tpu_custom_call.1} parent=27 // pred_check_branch
          %157 = sbr.rel (%p155) target = $region36
        $region35: #{tpu_custom_call.1} parent=27 // pred_region
          %s158 = smul.u32 %s23, 8
          %s159 = smul.u32 %s22, 32
          %s160 = sadd.s32 %s158, %s159
          %s161 = smul.addr %s160, 16
          %s162 = scalar_lea.hbm %s0, %s161
          %s163 = smul.u32 %s153, 24
          %s164 = scalar_lea.vmem [#allocation2], %s163
          %s165 = scalar_lea.sflag [#allocation3], %s153
          // Predicated region
          $region37: #{tpu_custom_call.1} parent=35 // pred_check
            _
          $region38: #{tpu_custom_call.1} parent=35 // pred_check_branch
            %167 = sbr.rel target = $region40
          $region39: #{tpu_custom_call.1} parent=35 // pred_region
            %168 = sst [smem:[#allocation10]] [#allocation9]
            %169 = sst [smem:[#allocation11]] [#allocation8]
          $region40: #{tpu_custom_call.1} parent=35 // pred_fallthru
            _
          %171 = shalt.err (0)
          %s173 = sshll.u32 %s164, 4
          %s174 = int_to_ptr.vmem [resolvable:$true] %s173
          %176 = dma.hbm_to_vmem [thread:$0]  %s162, 384, %s174, %s165
        $region36: #{tpu_custom_call.1} parent=27 // pred_fallthru
          _
        %s177 = sadd.s32 %s23, 1
        %p178 = scmp.lt.s32.totalorder %s177, 2
        // Predicated region
        $region41: #{tpu_custom_call.1} parent=27 // pred_check
          %p179 = pneg %p178
        $region42: #{tpu_custom_call.1} parent=27 // pred_check_branch
          %181 = sbr.rel (%p179) target = $region44
        $region43: #{tpu_custom_call.1} parent=27 // pred_region
          %s182 = ssub.s32 1, %s153
          %s183 = smul.u32 %s177, 8
          %s184 = smul.u32 %s22, 32
          %s185 = sadd.s32 %s183, %s184
          %s186 = smul.addr %s185, 16
          %s187 = scalar_lea.hbm %s0, %s186
          %s188 = smul.u32 %s182, 24
          %s189 = scalar_lea.vmem [#allocation2], %s188
          %s190 = scalar_lea.sflag [#allocation3], %s182
          // Predicated region
          $region45: #{tpu_custom_call.1} parent=43 // pred_check
            _
          $region46: #{tpu_custom_call.1} parent=43 // pred_check_branch
            %192 = sbr.rel target = $region48
          $region47: #{tpu_custom_call.1} parent=43 // pred_region
            %193 = sst [smem:[#allocation10]] [#allocation13]
            %194 = sst [smem:[#allocation11]] [#allocation12]
          $region48: #{tpu_custom_call.1} parent=43 // pred_fallthru
            _
          %196 = shalt.err (0)
          %s198 = sshll.u32 %s189, 4
          %s199 = int_to_ptr.vmem [resolvable:$true] %s198
          %201 = dma.hbm_to_vmem [thread:$0]  %s187, 384, %s199, %s190
        $region44: #{tpu_custom_call.1} parent=27 // pred_fallthru
          _
        %s202 = smul.u32 %s23, 8
        %s203 = smul.u32 %s153, 24
        %s204 = scalar_lea.vmem [#allocation2], %s203
        %s205 = scalar_lea.sflag [#allocation3], %s153
        %s206 = smul.u32 24, 1
        %s207 = sshll.u32 %s206, 4
        %208 = dma.done %s205, %s207
        %v209 = vld [vmem:[%s2] sm:$0x1]
        %v211 = vlaneseq
        %v212 = vshrl.u32 %v211, 7
        %v213 = vsub.s32 0, %v212
        %v214 = vrot.slane %v209, %v213
        %v216 = vld [vmem:[%s204] sm:$0xff]
        %v217 = vpack.c.bf16 %v216, %v216
        %v218 = vld [vmem:[%s204 + $0x2] sm:$0xff]
        %v219 = vpack.c.bf16 %v218, %v218
        %v220 = vld [vmem:[#allocation4] sm:$0xf]
        %v221 = vld [vmem:[#allocation4 + $0x4] sm:$0xf]
        %v222 = vld [vmem:[#allocation4 + $0x8] sm:$0xf]
        %v223 = vld [vmem:[#allocation4 + $0xc] sm:$0xf]
        %v224 = vld [vmem:[#allocation4 + $0x10] sm:$0xf]
        %v225 = vld [vmem:[#allocation4 + $0x14] sm:$0xf]
        %v226 = vld [vmem:[#allocation4 + $0x18] sm:$0xf]
        %v227 = vld [vmem:[#allocation4 + $0x1c] sm:$0xf]
        %v228 = vld [vmem:[#allocation4 + $0x20] sm:$0xf]
        %v229 = vld [vmem:[#allocation4 + $0x24] sm:$0xf]
        %v230 = vld [vmem:[#allocation4 + $0x28] sm:$0xf]
        %v231 = vld [vmem:[#allocation4 + $0x2c] sm:$0xf]
        %v232 = vld [vmem:[#allocation4 + $0x30] sm:$0xf]
        %v233 = vld [vmem:[#allocation4 + $0x34] sm:$0xf]
        %v234 = vld [vmem:[#allocation4 + $0x38] sm:$0xf]
        %v235 = vld [vmem:[#allocation4 + $0x3c] sm:$0xf]
        %v236 = vld [vmem:[#allocation4 + $0x40] sm:$0xf]
        %v237 = vld [vmem:[#allocation4 + $0x44] sm:$0xf]
        %v238 = vld [vmem:[#allocation4 + $0x48] sm:$0xf]
        %v239 = vld [vmem:[#allocation4 + $0x4c] sm:$0xf]
        %v240 = vld [vmem:[#allocation4 + $0x50] sm:$0xf]
        %v241 = vld [vmem:[#allocation4 + $0x54] sm:$0xf]
        %v242 = vld [vmem:[#allocation4 + $0x58] sm:$0xf]
        %v243 = vld [vmem:[#allocation4 + $0x5c] sm:$0xf]
        %v244 = vld [vmem:[#allocation4 + $0x60] sm:$0xf]
        %v245 = vld [vmem:[#allocation4 + $0x64] sm:$0xf]
        %v246 = vld [vmem:[#allocation4 + $0x68] sm:$0xf]
        %v247 = vld [vmem:[#allocation4 + $0x6c] sm:$0xf]
        %v248 = vld [vmem:[#allocation4 + $0x70] sm:$0xf]
        %v249 = vld [vmem:[#allocation4 + $0x74] sm:$0xf]
        %v250 = vld [vmem:[#allocation4 + $0x78] sm:$0xf]
        %v251 = vld [vmem:[#allocation4 + $0x7c] sm:$0xf]
        %v284 = vunpack.c.l.b16 %v220
        %v285 = vunpack.c.l.b16 %v221
        %v286 = vunpack.c.l.b16 %v222
        %v287 = vunpack.c.l.b16 %v223
        %v288 = vunpack.c.l.b16 %v224
        %v289 = vunpack.c.l.b16 %v225
        %v290 = vunpack.c.l.b16 %v226
        %v291 = vunpack.c.l.b16 %v227
        %v292 = vunpack.c.l.b16 %v228
        %v293 = vunpack.c.l.b16 %v229
        %v294 = vunpack.c.l.b16 %v230
        %v295 = vunpack.c.l.b16 %v231
        %v296 = vunpack.c.l.b16 %v232
        %v297 = vunpack.c.l.b16 %v233
        %v298 = vunpack.c.l.b16 %v234
        %v299 = vunpack.c.l.b16 %v235
        %v300 = vunpack.c.l.b16 %v236
        %v301 = vunpack.c.l.b16 %v237
        %v302 = vunpack.c.l.b16 %v238
        %v303 = vunpack.c.l.b16 %v239
        %v304 = vunpack.c.l.b16 %v240
        %v305 = vunpack.c.l.b16 %v241
        %v306 = vunpack.c.l.b16 %v242
        %v307 = vunpack.c.l.b16 %v243
        %v308 = vunpack.c.l.b16 %v244
        %v309 = vunpack.c.l.b16 %v245
        %v310 = vunpack.c.l.b16 %v246
        %v311 = vunpack.c.l.b16 %v247
        %v312 = vunpack.c.l.b16 %v248
        %v313 = vunpack.c.l.b16 %v249
        %v314 = vunpack.c.l.b16 %v250
        %v315 = vunpack.c.l.b16 %v251
        %v316 = vpack.c.b16 %v285, %v284
        %v317 = vpack.c.b16 %v287, %v286
        %v318 = vpack.c.b16 %v289, %v288
        %v319 = vpack.c.b16 %v291, %v290
        %v320 = vpack.c.b16 %v293, %v292
        %v321 = vpack.c.b16 %v295, %v294
        %v322 = vpack.c.b16 %v297, %v296
        %v323 = vpack.c.b16 %v299, %v298
        %v324 = vpack.c.b16 %v301, %v300
        %v325 = vpack.c.b16 %v303, %v302
        %v326 = vpack.c.b16 %v305, %v304
        %v327 = vpack.c.b16 %v307, %v306
        %v328 = vpack.c.b16 %v309, %v308
        %v329 = vpack.c.b16 %v311, %v310
        %v330 = vpack.c.b16 %v313, %v312
        %v331 = vpack.c.b16 %v315, %v314
        %348 = vmatprep.subr.bf16.mxu0 0
        %349 = vmatpush1.bf16.msra.mxu0 %v316
        %350 = vmatprep.subr.bf16.mxu0 0
        %351 = vmatpush1.bf16.msra.mxu0 %v317
        %352 = vmatprep.subr.bf16.mxu0 0
        %353 = vmatpush1.bf16.msra.mxu0 %v318
        %354 = vmatprep.subr.bf16.mxu0 0
        %355 = vmatpush1.bf16.msra.mxu0 %v319
        %356 = vmatprep.subr.bf16.mxu0 0
        %357 = vmatpush1.bf16.msra.mxu0 %v320
        %358 = vmatprep.subr.bf16.mxu0 0
        %359 = vmatpush1.bf16.msra.mxu0 %v321
        %360 = vmatprep.subr.bf16.mxu0 0
        %361 = vmatpush1.bf16.msra.mxu0 %v322
        %362 = vmatprep.subr.bf16.mxu0 0
        %363 = vmatpush1.bf16.msra.mxu0 %v323
        %364 = vmatprep.subr.bf16.mxu0 0
        %365 = vmatpush1.bf16.msra.mxu0 %v324
        %366 = vmatprep.subr.bf16.mxu0 0
        %367 = vmatpush1.bf16.msra.mxu0 %v325
        %368 = vmatprep.subr.bf16.mxu0 0
        %369 = vmatpush1.bf16.msra.mxu0 %v326
        %370 = vmatprep.subr.bf16.mxu0 0
        %371 = vmatpush1.bf16.msra.mxu0 %v327
        %372 = vmatprep.subr.bf16.mxu0 0
        %373 = vmatpush1.bf16.msra.mxu0 %v328
        %374 = vmatprep.subr.bf16.mxu0 0
        %375 = vmatpush1.bf16.msra.mxu0 %v329
        %376 = vmatprep.subr.bf16.mxu0 0
        %377 = vmatpush1.bf16.msra.mxu0 %v330
        %378 = vmatprep.subr.bf16.mxu0 0
        %379 = vmatpush1.bf16.msra.mxu0 %v331
        %380 = vmatprep.mubr.bf16.mxu0 %v219
        %381 = vmatmul.mubr.bf16.gmra.mrb[0].mxu0 %v217
        %v382 = vpop.f32.mrb[0].mxu0
        %v383 = vadd.f32 0.0, %v382
        %v384 = vpop.f32.mrb[0].mxu0
        %v385 = vpop.f32.mrb[0].mxu0
        %v386 = vpop.f32.mrb[0].mxu0
        %387 = vdwg.mxu0
        %v388 = vadd.f32 %v214, %v383
        %v389 = vld [vmem:[%s204 + $0x4] sm:$0xff]
        %v390 = vpack.c.bf16 %v389, %v389
        %v391 = vld [vmem:[%s204 + $0x6] sm:$0xff]
        %v392 = vpack.c.bf16 %v391, %v391
        %s393 = scalar_lea.vmem [#allocation4], 128
        %v394 = vld [vmem:[%s393] sm:$0xf]
        %v395 = vld [vmem:[%s393 + $0x4] sm:$0xf]
        %v396 = vld [vmem:[%s393 + $0x8] sm:$0xf]
        %v397 = vld [vmem:[%s393 + $0xc] sm:$0xf]
        %v398 = vld [vmem:[%s393 + $0x10] sm:$0xf]
        %v399 = vld [vmem:[%s393 + $0x14] sm:$0xf]
        %v400 = vld [vmem:[%s393 + $0x18] sm:$0xf]
        %v401 = vld [vmem:[%s393 + $0x1c] sm:$0xf]
        %v402 = vld [vmem:[%s393 + $0x20] sm:$0xf]
        %v403 = vld [vmem:[%s393 + $0x24] sm:$0xf]
        %v404 = vld [vmem:[%s393 + $0x28] sm:$0xf]
        %v405 = vld [vmem:[%s393 + $0x2c] sm:$0xf]
        %v406 = vld [vmem:[%s393 + $0x30] sm:$0xf]
        %v407 = vld [vmem:[%s393 + $0x34] sm:$0xf]
        %v408 = vld [vmem:[%s393 + $0x38] sm:$0xf]
        %v409 = vld [vmem:[%s393 + $0x3c] sm:$0xf]
        %v410 = vld [vmem:[%s393 + $0x40] sm:$0xf]
        %v411 = vld [vmem:[%s393 + $0x44] sm:$0xf]
        %v412 = vld [vmem:[%s393 + $0x48] sm:$0xf]
        %v413 = vld [vmem:[%s393 + $0x4c] sm:$0xf]
        %v414 = vld [vmem:[%s393 + $0x50] sm:$0xf]
        %v415 = vld [vmem:[%s393 + $0x54] sm:$0xf]
        %v416 = vld [vmem:[%s393 + $0x58] sm:$0xf]
        %v417 = vld [vmem:[%s393 + $0x5c] sm:$0xf]
        %v418 = vld [vmem:[%s393 + $0x60] sm:$0xf]
        %v419 = vld [vmem:[%s393 + $0x64] sm:$0xf]
        %v420 = vld [vmem:[%s393 + $0x68] sm:$0xf]
        %v421 = vld [vmem:[%s393 + $0x6c] sm:$0xf]
        %v422 = vld [vmem:[%s393 + $0x70] sm:$0xf]
        %v423 = vld [vmem:[%s393 + $0x74] sm:$0xf]
        %v424 = vld [vmem:[%s393 + $0x78] sm:$0xf]
        %v425 = vld [vmem:[%s393 + $0x7c] sm:$0xf]
        %v458 = vunpack.c.l.b16 %v394
        %v459 = vunpack.c.l.b16 %v395
        %v460 = vunpack.c.l.b16 %v396
        %v461 = vunpack.c.l.b16 %v397
        %v462 = vunpack.c.l.b16 %v398
        %v463 = vunpack.c.l.b16 %v399
        %v464 = vunpack.c.l.b16 %v400
        %v465 = vunpack.c.l.b16 %v401
        %v466 = vunpack.c.l.b16 %v402
        %v467 = vunpack.c.l.b16 %v403
        %v468 = vunpack.c.l.b16 %v404
        %v469 = vunpack.c.l.b16 %v405
        %v470 = vunpack.c.l.b16 %v406
        %v471 = vunpack.c.l.b16 %v407
        %v472 = vunpack.c.l.b16 %v408
        %v473 = vunpack.c.l.b16 %v409
        %v474 = vunpack.c.l.b16 %v410
        %v475 = vunpack.c.l.b16 %v411
        %v476 = vunpack.c.l.b16 %v412
        %v477 = vunpack.c.l.b16 %v413
        %v478 = vunpack.c.l.b16 %v414
        %v479 = vunpack.c.l.b16 %v415
        %v480 = vunpack.c.l.b16 %v416
        %v481 = vunpack.c.l.b16 %v417
        %v482 = vunpack.c.l.b16 %v418
        %v483 = vunpack.c.l.b16 %v419
        %v484 = vunpack.c.l.b16 %v420
        %v485 = vunpack.c.l.b16 %v421
        %v486 = vunpack.c.l.b16 %v422
        %v487 = vunpack.c.l.b16 %v423
        %v488 = vunpack.c.l.b16 %v424
        %v489 = vunpack.c.l.b16 %v425
        %v490 = vpack.c.b16 %v459, %v458
        %v491 = vpack.c.b16 %v461, %v460
        %v492 = vpack.c.b16 %v463, %v462
        %v493 = vpack.c.b16 %v465, %v464
        %v494 = vpack.c.b16 %v467, %v466
        %v495 = vpack.c.b16 %v469, %v468
        %v496 = vpack.c.b16 %v471, %v470
        %v497 = vpack.c.b16 %v473, %v472
        %v498 = vpack.c.b16 %v475, %v474
        %v499 = vpack.c.b16 %v477, %v476
        %v500 = vpack.c.b16 %v479, %v478
        %v501 = vpack.c.b16 %v481, %v480
        %v502 = vpack.c.b16 %v483, %v482
        %v503 = vpack.c.b16 %v485, %v484
        %v504 = vpack.c.b16 %v487, %v486
        %v505 = vpack.c.b16 %v489, %v488
        %522 = vmatprep.subr.bf16.mxu0 0
        %523 = vmatpush1.bf16.msra.mxu0 %v490
        %524 = vmatprep.subr.bf16.mxu0 0
        %525 = vmatpush1.bf16.msra.mxu0 %v491
        %526 = vmatprep.subr.bf16.mxu0 0
        %527 = vmatpush1.bf16.msra.mxu0 %v492
        %528 = vmatprep.subr.bf16.mxu0 0
        %529 = vmatpush1.bf16.msra.mxu0 %v493
        %530 = vmatprep.subr.bf16.mxu0 0
        %531 = vmatpush1.bf16.msra.mxu0 %v494
        %532 = vmatprep.subr.bf16.mxu0 0
        %533 = vmatpush1.bf16.msra.mxu0 %v495
        %534 = vmatprep.subr.bf16.mxu0 0
        %535 = vmatpush1.bf16.msra.mxu0 %v496
        %536 = vmatprep.subr.bf16.mxu0 0
        %537 = vmatpush1.bf16.msra.mxu0 %v497
        %538 = vmatprep.subr.bf16.mxu0 0
        %539 = vmatpush1.bf16.msra.mxu0 %v498
        %540 = vmatprep.subr.bf16.mxu0 0
        %541 = vmatpush1.bf16.msra.mxu0 %v499
        %542 = vmatprep.subr.bf16.mxu0 0
        %543 = vmatpush1.bf16.msra.mxu0 %v500
        %544 = vmatprep.subr.bf16.mxu0 0
        %545 = vmatpush1.bf16.msra.mxu0 %v501
        %546 = vmatprep.subr.bf16.mxu0 0
        %547 = vmatpush1.bf16.msra.mxu0 %v502
        %548 = vmatprep.subr.bf16.mxu0 0
        %549 = vmatpush1.bf16.msra.mxu0 %v503
        %550 = vmatprep.subr.bf16.mxu0 0
        %551 = vmatpush1.bf16.msra.mxu0 %v504
        %552 = vmatprep.subr.bf16.mxu0 0
        %553 = vmatpush1.bf16.msra.mxu0 %v505
        %554 = vmatprep.mubr.bf16.mxu0 %v392
        %555 = vmatmul.mubr.bf16.gmra.mrb[0].mxu0 %v390
        %v556 = vpop.f32.mrb[0].mxu0
        %v557 = vadd.f32 0.0, %v556
        %v558 = vpop.f32.mrb[0].mxu0
        %v559 = vpop.f32.mrb[0].mxu0
        %v560 = vpop.f32.mrb[0].mxu0
        %561 = vdwg.mxu0
        %v562 = vadd.f32 %v388, %v557
        %v563 = vld [vmem:[%s204 + $0x8] sm:$0xff]
        %v564 = vpack.c.bf16 %v563, %v563
        %v565 = vld [vmem:[%s204 + $0xa] sm:$0xff]
        %v566 = vpack.c.bf16 %v565, %v565
        %s567 = scalar_lea.vmem [#allocation4], 256
        %v568 = vld [vmem:[%s567] sm:$0xf]
        %v569 = vld [vmem:[%s567 + $0x4] sm:$0xf]
        %v570 = vld [vmem:[%s567 + $0x8] sm:$0xf]
        %v571 = vld [vmem:[%s567 + $0xc] sm:$0xf]
        %v572 = vld [vmem:[%s567 + $0x10] sm:$0xf]
        %v573 = vld [vmem:[%s567 + $0x14] sm:$0xf]
        %v574 = vld [vmem:[%s567 + $0x18] sm:$0xf]
        %v575 = vld [vmem:[%s567 + $0x1c] sm:$0xf]
        %v576 = vld [vmem:[%s567 + $0x20] sm:$0xf]
        %v577 = vld [vmem:[%s567 + $0x24] sm:$0xf]
        %v578 = vld [vmem:[%s567 + $0x28] sm:$0xf]
        %v579 = vld [vmem:[%s567 + $0x2c] sm:$0xf]
        %v580 = vld [vmem:[%s567 + $0x30] sm:$0xf]
        %v581 = vld [vmem:[%s567 + $0x34] sm:$0xf]
        %v582 = vld [vmem:[%s567 + $0x38] sm:$0xf]
        %v583 = vld [vmem:[%s567 + $0x3c] sm:$0xf]
        %v584 = vld [vmem:[%s567 + $0x40] sm:$0xf]
        %v585 = vld [vmem:[%s567 + $0x44] sm:$0xf]
        %v586 = vld [vmem:[%s567 + $0x48] sm:$0xf]
        %v587 = vld [vmem:[%s567 + $0x4c] sm:$0xf]
        %v588 = vld [vmem:[%s567 + $0x50] sm:$0xf]
        %v589 = vld [vmem:[%s567 + $0x54] sm:$0xf]
        %v590 = vld [vmem:[%s567 + $0x58] sm:$0xf]
        %v591 = vld [vmem:[%s567 + $0x5c] sm:$0xf]
        %v592 = vld [vmem:[%s567 + $0x60] sm:$0xf]
        %v593 = vld [vmem:[%s567 + $0x64] sm:$0xf]
        %v594 = vld [vmem:[%s567 + $0x68] sm:$0xf]
        %v595 = vld [vmem:[%s567 + $0x6c] sm:$0xf]
        %v596 = vld [vmem:[%s567 + $0x70] sm:$0xf]
        %v597 = vld [vmem:[%s567 + $0x74] sm:$0xf]
        %v598 = vld [vmem:[%s567 + $0x78] sm:$0xf]
        %v599 = vld [vmem:[%s567 + $0x7c] sm:$0xf]
        %v632 = vunpack.c.l.b16 %v568
        %v633 = vunpack.c.l.b16 %v569
        %v634 = vunpack.c.l.b16 %v570
        %v635 = vunpack.c.l.b16 %v571
        %v636 = vunpack.c.l.b16 %v572
        %v637 = vunpack.c.l.b16 %v573
        %v638 = vunpack.c.l.b16 %v574
        %v639 = vunpack.c.l.b16 %v575
        %v640 = vunpack.c.l.b16 %v576
        %v641 = vunpack.c.l.b16 %v577
        %v642 = vunpack.c.l.b16 %v578
        %v643 = vunpack.c.l.b16 %v579
        %v644 = vunpack.c.l.b16 %v580
        %v645 = vunpack.c.l.b16 %v581
        %v646 = vunpack.c.l.b16 %v582
        %v647 = vunpack.c.l.b16 %v583
        %v648 = vunpack.c.l.b16 %v584
        %v649 = vunpack.c.l.b16 %v585
        %v650 = vunpack.c.l.b16 %v586
        %v651 = vunpack.c.l.b16 %v587
        %v652 = vunpack.c.l.b16 %v588
        %v653 = vunpack.c.l.b16 %v589
        %v654 = vunpack.c.l.b16 %v590
        %v655 = vunpack.c.l.b16 %v591
        %v656 = vunpack.c.l.b16 %v592
        %v657 = vunpack.c.l.b16 %v593
        %v658 = vunpack.c.l.b16 %v594
        %v659 = vunpack.c.l.b16 %v595
        %v660 = vunpack.c.l.b16 %v596
        %v661 = vunpack.c.l.b16 %v597
        %v662 = vunpack.c.l.b16 %v598
        %v663 = vunpack.c.l.b16 %v599
        %v664 = vpack.c.b16 %v633, %v632
        %v665 = vpack.c.b16 %v635, %v634
        %v666 = vpack.c.b16 %v637, %v636
        %v667 = vpack.c.b16 %v639, %v638
        %v668 = vpack.c.b16 %v641, %v640
        %v669 = vpack.c.b16 %v643, %v642
        %v670 = vpack.c.b16 %v645, %v644
        %v671 = vpack.c.b16 %v647, %v646
        %v672 = vpack.c.b16 %v649, %v648
        %v673 = vpack.c.b16 %v651, %v650
        %v674 = vpack.c.b16 %v653, %v652
        %v675 = vpack.c.b16 %v655, %v654
        %v676 = vpack.c.b16 %v657, %v656
        %v677 = vpack.c.b16 %v659, %v658
        %v678 = vpack.c.b16 %v661, %v660
        %v679 = vpack.c.b16 %v663, %v662
        %696 = vmatprep.subr.bf16.mxu0 0
        %697 = vmatpush1.bf16.msra.mxu0 %v664
        %698 = vmatprep.subr.bf16.mxu0 0
        %699 = vmatpush1.bf16.msra.mxu0 %v665
        %700 = vmatprep.subr.bf16.mxu0 0
        %701 = vmatpush1.bf16.msra.mxu0 %v666
        %702 = vmatprep.subr.bf16.mxu0 0
        %703 = vmatpush1.bf16.msra.mxu0 %v667
        %704 = vmatprep.subr.bf16.mxu0 0
        %705 = vmatpush1.bf16.msra.mxu0 %v668
        %706 = vmatprep.subr.bf16.mxu0 0
        %707 = vmatpush1.bf16.msra.mxu0 %v669
        %708 = vmatprep.subr.bf16.mxu0 0
        %709 = vmatpush1.bf16.msra.mxu0 %v670
        %710 = vmatprep.subr.bf16.mxu0 0
        %711 = vmatpush1.bf16.msra.mxu0 %v671
        %712 = vmatprep.subr.bf16.mxu0 0
        %713 = vmatpush1.bf16.msra.mxu0 %v672
        %714 = vmatprep.subr.bf16.mxu0 0
        %715 = vmatpush1.bf16.msra.mxu0 %v673
        %716 = vmatprep.subr.bf16.mxu0 0
        %717 = vmatpush1.bf16.msra.mxu0 %v674
        %718 = vmatprep.subr.bf16.mxu0 0
        %719 = vmatpush1.bf16.msra.mxu0 %v675
        %720 = vmatprep.subr.bf16.mxu0 0
        %721 = vmatpush1.bf16.msra.mxu0 %v676
        %722 = vmatprep.subr.bf16.mxu0 0
        %723 = vmatpush1.bf16.msra.mxu0 %v677
        %724 = vmatprep.subr.bf16.mxu0 0
        %725 = vmatpush1.bf16.msra.mxu0 %v678
        %726 = vmatprep.subr.bf16.mxu0 0
        %727 = vmatpush1.bf16.msra.mxu0 %v679
        %728 = vmatprep.mubr.bf16.mxu0 %v566
        %729 = vmatmul.mubr.bf16.gmra.mrb[0].mxu0 %v564
        %v730 = vpop.f32.mrb[0].mxu0
        %v731 = vadd.f32 0.0, %v730
        %v732 = vpop.f32.mrb[0].mxu0
        %v733 = vpop.f32.mrb[0].mxu0
        %v734 = vpop.f32.mrb[0].mxu0
        %735 = vdwg.mxu0
        %v736 = vadd.f32 %v562, %v731
        %v737 = vld [vmem:[%s204 + $0xc] sm:$0xff]
        %v738 = vpack.c.bf16 %v737, %v737
        %s739 = scalar_lea.vmem [#allocation4], 384
        %v740 = vld [vmem:[%s739] sm:$0xf]
        %v741 = vld [vmem:[%s739 + $0x4] sm:$0xf]
        %v742 = vld [vmem:[%s739 + $0x8] sm:$0xf]
        %v743 = vld [vmem:[%s739 + $0xc] sm:$0xf]
        %v744 = vld [vmem:[%s739 + $0x10] sm:$0xf]
        %v745 = vld [vmem:[%s739 + $0x14] sm:$0xf]
        %v746 = vld [vmem:[%s739 + $0x18] sm:$0xf]
        %v747 = vld [vmem:[%s739 + $0x1c] sm:$0xf]
        %v748 = vld [vmem:[%s739 + $0x20] sm:$0xf]
        %v749 = vld [vmem:[%s739 + $0x24] sm:$0xf]
        %v750 = vld [vmem:[%s739 + $0x28] sm:$0xf]
        %v751 = vld [vmem:[%s739 + $0x2c] sm:$0xf]
        %v752 = vld [vmem:[%s739 + $0x30] sm:$0xf]
        %v753 = vld [vmem:[%s739 + $0x34] sm:$0xf]
        %v754 = vld [vmem:[%s739 + $0x38] sm:$0xf]
        %v755 = vld [vmem:[%s739 + $0x3c] sm:$0xf]
        %v756 = vld [vmem:[%s739 + $0x40] sm:$0xf]
        %v757 = vld [vmem:[%s739 + $0x44] sm:$0xf]
        %v758 = vld [vmem:[%s739 + $0x48] sm:$0xf]
        %v759 = vld [vmem:[%s739 + $0x4c] sm:$0xf]
        %v760 = vld [vmem:[%s739 + $0x50] sm:$0xf]
        %v761 = vld [vmem:[%s739 + $0x54] sm:$0xf]
        %v762 = vld [vmem:[%s739 + $0x58] sm:$0xf]
        %v763 = vld [vmem:[%s739 + $0x5c] sm:$0xf]
        %v764 = vld [vmem:[%s739 + $0x60] sm:$0xf]
        %v765 = vld [vmem:[%s739 + $0x64] sm:$0xf]
        %v766 = vld [vmem:[%s739 + $0x68] sm:$0xf]
        %v767 = vld [vmem:[%s739 + $0x6c] sm:$0xf]
        %v768 = vld [vmem:[%s739 + $0x70] sm:$0xf]
        %v769 = vld [vmem:[%s739 + $0x74] sm:$0xf]
        %v770 = vld [vmem:[%s739 + $0x78] sm:$0xf]
        %v771 = vld [vmem:[%s739 + $0x7c] sm:$0xf]
        %v804 = vunpack.c.l.b16 %v740
        %v805 = vunpack.c.l.b16 %v741
        %v806 = vunpack.c.l.b16 %v742
        %v807 = vunpack.c.l.b16 %v743
        %v808 = vunpack.c.l.b16 %v744
        %v809 = vunpack.c.l.b16 %v745
        %v810 = vunpack.c.l.b16 %v746
        %v811 = vunpack.c.l.b16 %v747
        %v812 = vunpack.c.l.b16 %v748
        %v813 = vunpack.c.l.b16 %v749
        %v814 = vunpack.c.l.b16 %v750
        %v815 = vunpack.c.l.b16 %v751
        %v816 = vunpack.c.l.b16 %v752
        %v817 = vunpack.c.l.b16 %v753
        %v818 = vunpack.c.l.b16 %v754
        %v819 = vunpack.c.l.b16 %v755
        %v820 = vunpack.c.l.b16 %v756
        %v821 = vunpack.c.l.b16 %v757
        %v822 = vunpack.c.l.b16 %v758
        %v823 = vunpack.c.l.b16 %v759
        %v824 = vunpack.c.l.b16 %v760
        %v825 = vunpack.c.l.b16 %v761
        %v826 = vunpack.c.l.b16 %v762
        %v827 = vunpack.c.l.b16 %v763
        %v828 = vunpack.c.l.b16 %v764
        %v829 = vunpack.c.l.b16 %v765
        %v830 = vunpack.c.l.b16 %v766
        %v831 = vunpack.c.l.b16 %v767
        %v832 = vunpack.c.l.b16 %v768
        %v833 = vunpack.c.l.b16 %v769
        %v834 = vunpack.c.l.b16 %v770
        %v835 = vunpack.c.l.b16 %v771
        %v836 = vpack.c.b16 %v805, %v804
        %v837 = vpack.c.b16 %v807, %v806
        %v838 = vpack.c.b16 %v809, %v808
        %v839 = vpack.c.b16 %v811, %v810
        %v840 = vpack.c.b16 %v813, %v812
        %v841 = vpack.c.b16 %v815, %v814
        %v842 = vpack.c.b16 %v817, %v816
        %v843 = vpack.c.b16 %v819, %v818
        %v844 = vpack.c.b16 %v821, %v820
        %v845 = vpack.c.b16 %v823, %v822
        %v846 = vpack.c.b16 %v825, %v824
        %v847 = vpack.c.b16 %v827, %v826
        %v848 = vpack.c.b16 %v829, %v828
        %v849 = vpack.c.b16 %v831, %v830
        %v850 = vpack.c.b16 %v833, %v832
        %v851 = vpack.c.b16 %v835, %v834
        %868 = vmatprep.subr.bf16.mxu0 0
        %869 = vmatpush1.bf16.msra.mxu0 %v836
        %870 = vmatprep.subr.bf16.mxu0 0
        %871 = vmatpush1.bf16.msra.mxu0 %v837
        %872 = vmatprep.subr.bf16.mxu0 0
        %873 = vmatpush1.bf16.msra.mxu0 %v838
        %874 = vmatprep.subr.bf16.mxu0 0
        %875 = vmatpush1.bf16.msra.mxu0 %v839
        %876 = vmatprep.subr.bf16.mxu0 0
        %877 = vmatpush1.bf16.msra.mxu0 %v840
        %878 = vmatprep.subr.bf16.mxu0 0
        %879 = vmatpush1.bf16.msra.mxu0 %v841
        %880 = vmatprep.subr.bf16.mxu0 0
        %881 = vmatpush1.bf16.msra.mxu0 %v842
        %882 = vmatprep.subr.bf16.mxu0 0
        %883 = vmatpush1.bf16.msra.mxu0 %v843
        %884 = vmatprep.subr.bf16.mxu0 0
        %885 = vmatpush1.bf16.msra.mxu0 %v844
        %886 = vmatprep.subr.bf16.mxu0 0
        %887 = vmatpush1.bf16.msra.mxu0 %v845
        %888 = vmatprep.subr.bf16.mxu0 0
        %889 = vmatpush1.bf16.msra.mxu0 %v846
        %890 = vmatprep.subr.bf16.mxu0 0
        %891 = vmatpush1.bf16.msra.mxu0 %v847
        %892 = vmatprep.subr.bf16.mxu0 0
        %893 = vmatpush1.bf16.msra.mxu0 %v848
        %894 = vmatprep.subr.bf16.mxu0 0
        %895 = vmatpush1.bf16.msra.mxu0 %v849
        %896 = vmatprep.subr.bf16.mxu0 0
        %897 = vmatpush1.bf16.msra.mxu0 %v850
        %898 = vmatprep.subr.bf16.mxu0 0
        %899 = vmatpush1.bf16.msra.mxu0 %v851
        %900 = vmatprep.mubr.bf16.mxu0 %v738
        %901 = vmatmul.mubr.bf16.gmra.mrb[0].mxu0 %v738
        %v902 = vpop.f32.mrb[0].mxu0
        %v903 = vadd.f32 0.0, %v902
        %v904 = vpop.f32.mrb[0].mxu0
        %v905 = vpop.f32.mrb[0].mxu0
        %v906 = vpop.f32.mrb[0].mxu0
        %907 = vdwg.mxu0
        %v908 = vadd.f32 %v736, %v903
        %vm909 = vcmp.gt.f32.partialorder %v908, 0.0
        %v910 = vmin.f32 %v908, 0.0
        %v911 = vmul.f32 %v910, 1.442695
        %v912 = vpow.pop %v911
        %v913 = vsub.f32 %v912, 1.0
        %v914 = vsel %vm909, %v908, %v913
        %v915 = vadd.f32 %v391, %v914
        %916 = vst [vmem:[%s151] sm:$0xff] %v915
        %s917 = sand.u32 %s82, 1
        %s918 = scalar_lea.sflag [#allocation6], %s917
        %s919 = sand.u32 %s82, 1
        %s920 = smul.addr %s919, 8
        %s921 = scalar_lea.vmem [#allocation7], %s920
        // Predicated region
        $region49: #{tpu_custom_call.1} parent=27 // pred_check
          %p922 = pneg %p92
        $region50: #{tpu_custom_call.1} parent=27 // pred_check_branch
          %924 = sbr.rel (%p922) target = $region52
        $region51: #{tpu_custom_call.1} parent=27 // pred_region
          %s926 = ssub.s32 128, 128
          %927 = vsyncadd %s918, %s926
          %s928 = smul.addr %s22, 2
          %s929 = sadd.s32 %s23, %s928
          %s930 = smul.addr %s929, 128
          %s931 = scalar_lea.hbm %s3, %s930
          %s933 = sshll.u32 %s921, 4
          %s934 = int_to_ptr.vmem [resolvable:$true] %s933
          %936 = dma.vmem_to_hbm [thread:$0]  %s934, 128, %s931, %s918
        $region52: #{tpu_custom_call.1} parent=27 // pred_fallthru
          _
      $region28: #{tpu_custom_call.1} parent=5 // pred_fallthru
        _
      %p937 = scmp.le.s32.totalorder 2, %s13
      // Predicated region
      $region53: #{tpu_custom_call.1} parent=5 // pred_check
        %p938 = pneg %p937
      $region54: #{tpu_custom_call.1} parent=5 // pred_check_branch
        %940 = sbr.rel (%p938) target = $region56
      $region55: #{tpu_custom_call.1} parent=5 // pred_region
        %s941 = ssub.s32 %s13, 2
        // Predicated region
        $region57: #{tpu_custom_call.1} parent=55 // pred_check
          %p942 = pneg %p98
        $region58: #{tpu_custom_call.1} parent=55 // pred_check_branch
          %944 = sbr.rel (%p942) target = $region60
        $region59: #{tpu_custom_call.1} parent=55 // pred_region
          %s945 = sand.u32 %s83, 1
          %s946 = scalar_lea.sflag [#allocation6], %s945
          %s947 = sand.u32 %s83, 1
          %s948 = smul.addr %s947, 8
          %s949 = scalar_lea.vmem [#allocation7], %s948
          %950 = dma.done %s946, 128
        $region60: #{tpu_custom_call.1} parent=55 // pred_fallthru
          _
      $region56: #{tpu_custom_call.1} parent=5 // pred_fallthru
        _
    $region6: #{tpu_custom_call.1} parent=1 // loop_footer
      %s17 = sadd.s32 1, %s13
    $region7: #{tpu_custom_call.1} parent=1 // loop_footer_branch
      %12 = sbr.rel target = $region3
    $region8: #{tpu_custom_call.1} parent=1 // loop_exit
      _
    %951 = vsyncpa [#allocation5], 1
    %s952 = scalar_lea.sflag [#allocation5], 1
    %953 = vsyncpa %s952, 1
    %954 = vsyncpa [#allocation6], 1
    %s955 = scalar_lea.sflag [#allocation6], 1
    %956 = vsyncpa %s955, 1
  %957 = vsyncmov [#allocation3]
  %s958 = vpop.sfrf %957
  %p959 = scmp.eq.s32.totalorder %s958, 0
  %p960 = pneg %p959
  %962 = shalt.err (%p960)
  %s963 = scalar_lea.sflag [#allocation3], 1
  %964 = vsyncmov %s963
  %s965 = vpop.sfrf %964
  %p966 = scmp.eq.s32.totalorder %s965, 0
  %p967 = pneg %p966
  %969 = shalt.err (%p967)

</llo_original>
